<compile_context>
chip_gen: v5e
topology: v5e:2x2
jax: 0.10.0
libtpu: 0.0.40
codegen_flags: <defaults>
</compile_context>

<pallas_src>
import functools

import numpy as np
import jax
import jax.numpy as jnp
from jax.experimental import pallas as pl
from jax.experimental.pallas import tpu as pltpu


# Per-grid-step VMEM budget for one (input tile + output tile) pair.  With the
# default double buffering this is ~2x -> ~8 MiB scoped VMEM.
_STEP_BYTES = 4 * 1024 * 1024
# Explicit scoped-VMEM limit: portable headroom on v5e/v6e/v7x.
_VMEM_LIMIT = 32 * 1024 * 1024
# Target at least this many grid steps (v7x megacore + DMA pipelining).
_MIN_STEPS = 8


def _cdiv(a: int, b: int) -> int:
    return -(-a // b)


def _roundup(x: int, m: int) -> int:
    return ((x + m - 1) // m) * m


def _sublane(itemsize: int) -> int:
    # Sublane packing: 8 rows for 32-bit, 16 for bf16, 32 for int8/fp8.
    return 8 * max(1, 4 // max(1, itemsize))


def _cost(x: jax.Array) -> pl.CostEstimate:
    nbytes = 2 * int(np.prod(x.shape)) * x.dtype.itemsize  # read + write once
    return pl.CostEstimate(flops=0, transcendentals=0, bytes_accessed=nbytes)


# --------------------------------------------------------------------------
# Kernels
# --------------------------------------------------------------------------
def _flat_transpose_kernel(x_ref, o_ref, *, s, h):
    # x_ref: (tb, s*h) lane-dense, o_ref: (tb, h*s) lane-dense.  The relayout
    # (reshape -> XLU transpose -> reshape) happens entirely in VMEM/vregs and
    # is hidden under the HBM DMAs of this bandwidth-bound kernel.
    tb = x_ref.shape[0]
    x = x_ref[...].reshape(tb, s, h)
    # TODO(synk): pltpu.einshape("bst->bts", x) may lower better for packed
    # dtypes (bf16/int8); jnp.swapaxes kept for guaranteed lowering (f32-neutral).
    o_ref[...] = jnp.swapaxes(x, 1, 2).reshape(tb, h * s)


def _swap_last2_kernel(x_ref, o_ref):
    # x_ref: (tb, TS, TH) -> o_ref: (tb, TH, TS); batched XLU minor transpose.
    o_ref[...] = jnp.swapaxes(x_ref[...], 1, 2)


# --------------------------------------------------------------------------
# Small trailing matrices: flattened, lane-dense blocks, batched over leading
# elements.
# --------------------------------------------------------------------------
def _transpose_flat(x3: jax.Array) -> jax.Array:
    B, S, H = x3.shape
    isz = x3.dtype.itemsize
    # Flattened tiles: logical == physical VMEM bytes (no lane padding).
    per_elem = 2 * _roundup(S * H, 128) * isz
    tb = min(_STEP_BYTES // per_elem, 1024, max(_MIN_STEPS, _cdiv(B, _MIN_STEPS)))
    if tb >= B:
        tb = B                       # block == full batch extent (always legal)
    else:
        tb = max(8, (tb // 8) * 8)   # keep the 2nd-minor block dim 8-aligned
    grid = (_cdiv(B, tb),)

    xf = x3.reshape(B, S * H)        # free: contiguous view
    out = pl.pallas_call(
        functools.partial(_flat_transpose_kernel, s=S, h=H),
        out_shape=jax.ShapeDtypeStruct((B, H * S), x3.dtype),
        grid=grid,
        in_specs=[pl.BlockSpec((tb, S * H), lambda b: (b, 0))],
        out_specs=pl.BlockSpec((tb, H * S), lambda b: (b, 0)),
        compiler_params=pltpu.CompilerParams(
            dimension_semantics=("parallel",),
            vmem_limit_bytes=_VMEM_LIMIT),
        cost_estimate=_cost(x3),
    )(xf)
    return out.reshape(B, H, S)      # free: contiguous view


# --------------------------------------------------------------------------
# General path: lane-aligned tiles over the trailing matrix (batched per step
# when the whole matrix fits one tile).
# --------------------------------------------------------------------------
def _transpose_tiled(x3: jax.Array) -> jax.Array:
    B, S, H = x3.shape
    isz = x3.dtype.itemsize
    sub = _sublane(isz)

    ts_cap = 512                                             # multiple of 128
    th_cap = max(128, ((_STEP_BYTES // 2) // (ts_cap * isz)) // 128 * 128)
    TS = S if S <= ts_cap else ts_cap                        # ==S or 512
    TH = H if H <= th_cap else th_cap                        # ==H or mult of 128

    # Padded (sublane x lane) VMEM footprint of one in+out tile pair.
    tile_pair = (_roundup(TS, sub) * _roundup(TH, 128) +
                 _roundup(TH, sub) * _roundup(TS, 128)) * isz

    if TS == S and TH == H:
        # Whole matrix fits a tile: batch matrices per step, but keep >=~8 steps.
        tb = max(1, min(_STEP_BYTES // tile_pair, 1024,
                        max(1, _cdiv(B, _MIN_STEPS))))
    else:
        tb = 1

    nB, nH, nS = _cdiv(B, tb), _cdiv(H, TH), _cdiv(S, TS)
    in_block, out_block = (tb, TS, TH), (tb, TH, TS)

    if nB >= nH:
        grid = (nB, nH, nS)
        in_map = lambda b, j, i: (b, i, j)
        out_map = lambda b, j, i: (b, j, i)
    else:
        # Put the larger extent first so v7x megacore shards it.
        grid = (nH, nB, nS)
        in_map = lambda j, b, i: (b, i, j)
        out_map = lambda j, b, i: (b, j, i)

    # TODO(synk): when S < 128 the output tile's lane dim is < 128 here (masked
    # stores); fully lane-dense handling for that case lives in _transpose_flat.
    out = pl.pallas_call(
        _swap_last2_kernel,
        out_shape=jax.ShapeDtypeStruct((B, H, S), x3.dtype),
        grid=grid,
        in_specs=[pl.BlockSpec(in_block, in_map)],
        out_specs=pl.BlockSpec(out_block, out_map),
        compiler_params=pltpu.CompilerParams(
            dimension_semantics=("parallel", "parallel", "parallel"),
            vmem_limit_bytes=_VMEM_LIMIT),
        cost_estimate=_cost(x3),
    )(x3)
    return out


# --------------------------------------------------------------------------
# Public wrapper: torch.transpose(x, dim1, dim2) semantics.
# --------------------------------------------------------------------------
def transpose_pallas(x: jax.Array, dim1: int, dim2: int) -> jax.Array:
    nd = x.ndim
    d1, d2 = sorted((dim1 % nd, dim2 % nd))
    if d1 == d2:
        return x
    if (d1, d2) != (nd - 2, nd - 1):
        # TODO(synk): non-trailing axis pairs need a different block layout;
        # fall back to the XLA transpose for those (semantics preserved).
        return jnp.swapaxes(x, d1, d2)

    lead = x.shape[: nd - 2]
    S, H = x.shape[-2], x.shape[-1]
    if S == 1 or H == 1:
        # Pure metadata move; no data motion needed.
        return jnp.swapaxes(x, d1, d2)

    B = int(np.prod(lead)) if lead else 1
    x3 = x.reshape(B, S, H)
    isz = x.dtype.itemsize

    # Flat path: output lane dim would be < 128 AND the whole matrix is small
    # enough that >= 8 batch elements fit the per-step VMEM budget.
    use_flat = (S < 128) and (2 * _roundup(S * H, 128) * isz * _MIN_STEPS
                              <= _STEP_BYTES)
    if use_flat:
        try:
            return _transpose_flat(x3).reshape(*lead, H, S)
        except Exception:
            # TODO(synk): this Mosaic build could not lower the in-kernel
            # minor-dim reshape; fall back to the correct (masked-store) path.
            pass
    return _transpose_tiled(x3).reshape(*lead, H, S)


if __name__ == "__main__":
    # TransposeLayer(dim1=1, dim2=2) applied to a (batch, seq, hidden) tensor.
    key = jax.random.PRNGKey(0)
    B, S, H = 2, 8, 32
    x = jax.random.normal(key, (B, S, H), dtype=jnp.float32)

    y = transpose_pallas(x, dim1=1, dim2=2)
    y = jax.block_until_ready(y)

    # Bit-exact reference check (pure data movement).
    y_ref = jnp.swapaxes(x, 1, 2)
    assert y.shape == (B, H, S), y.shape
    np.testing.assert_array_equal(np.asarray(y), np.asarray(y_ref))

    print("KERNEL_OK")
</pallas_src>

<mosaic_0001>
module attributes {stable_mosaic.version = 11 : i64} {
  func.func @_flat_transpose_kernel(%arg0: i32, %arg1: memref<2x256xf32, #tpu.memory_space<vmem>>, %arg2: memref<2x256xf32, #tpu.memory_space<vmem>>) attributes {dimension_semantics = [#tpu.dimension_semantics<parallel>], iteration_bounds = array<i64: 1>, scalar_prefetch = 0 : i64, scratch_operands = 0 : i64, tpu.core_type = #tpu.core_type<tc>, window_params = [{transform_indices = @transform_0, window_bounds = array<i64: 2, 256>}, {transform_indices = @transform_1, window_bounds = array<i64: 2, 256>}]} {
    %c0 = arith.constant 0 : index
    %c0_0 = arith.constant 0 : index
    %0 = vector.load %arg1[%c0, %c0_0] : memref<2x256xf32, #tpu.memory_space<vmem>>, vector<2x256xf32>
    %1 = vector.shape_cast %0 : vector<2x256xf32> to vector<2x8x32xf32>
    %2 = tpu.transpose %1, [0, 2, 1] : vector<2x8x32xf32> -> vector<2x32x8xf32>
    %3 = vector.shape_cast %2 : vector<2x32x8xf32> to vector<2x256xf32>
    %c0_1 = arith.constant 0 : index
    %c0_2 = arith.constant 0 : index
    %4 = vector.load %arg2[%c0_1, %c0_2] : memref<2x256xf32, #tpu.memory_space<vmem>>, vector<2x256xf32>
    tpu.vector_store %arg2[%c0_1, %c0_2], %3 {strides = array<i32>} : memref<2x256xf32, #tpu.memory_space<vmem>>, vector<2x256xf32>,
    return
  }
  func.func @transform_0(%arg0: i32) -> (i32, i32) {
    %c0_i32 = arith.constant 0 : i32
    %c0_i32_0 = arith.constant 0 : i32
    return %arg0, %c0_i32 : i32, i32
  }
  func.func @transform_1(%arg0: i32) -> (i32, i32) {
    %c0_i32 = arith.constant 0 : i32
    %c0_i32_0 = arith.constant 0 : i32
    return %arg0, %c0_i32 : i32, i32
  }
}

module attributes {stable_mosaic.version = 11 : i64} {
  func.func @_swap_last2_kernel(%arg0: i32, %arg1: i32, %arg2: i32, %arg3: memref<1x8x32xf32, #tpu.memory_space<vmem>>, %arg4: memref<1x32x8xf32, #tpu.memory_space<vmem>>) attributes {dimension_semantics = [#tpu.dimension_semantics<parallel>, #tpu.dimension_semantics<parallel>, #tpu.dimension_semantics<parallel>], iteration_bounds = array<i64: 2, 1, 1>, scalar_prefetch = 0 : i64, scratch_operands = 0 : i64, tpu.core_type = #tpu.core_type<tc>, window_params = [{transform_indices = @transform_0, window_bounds = array<i64: 1, 8, 32>}, {transform_indices = @transform_1, window_bounds = array<i64: 1, 32, 8>}]} {
    %c0 = arith.constant 0 : index
    %c0_0 = arith.constant 0 : index
    %c0_1 = arith.constant 0 : index
    %0 = vector.load %arg3[%c0, %c0_0, %c0_1] : memref<1x8x32xf32, #tpu.memory_space<vmem>>, vector<1x8x32xf32>
    %1 = tpu.transpose %0, [0, 2, 1] : vector<1x8x32xf32> -> vector<1x32x8xf32>
    %c0_2 = arith.constant 0 : index
    %c0_3 = arith.constant 0 : index
    %c0_4 = arith.constant 0 : index
    %2 = vector.load %arg4[%c0_2, %c0_3, %c0_4] : memref<1x32x8xf32, #tpu.memory_space<vmem>>, vector<1x32x8xf32>
    tpu.vector_store %arg4[%c0_2, %c0_3, %c0_4], %1 {strides = array<i32>} : memref<1x32x8xf32, #tpu.memory_space<vmem>>, vector<1x32x8xf32>,
    return
  }
  func.func @transform_0(%arg0: i32, %arg1: i32, %arg2: i32) -> (i32, i32, i32) {
    %c0_i32 = arith.constant 0 : i32
    return %arg0, %arg2, %arg1 : i32, i32, i32
  }
  func.func @transform_1(%arg0: i32, %arg1: i32, %arg2: i32) -> (i32, i32, i32) {
    %c0_i32 = arith.constant 0 : i32
    return %arg0, %arg1, %arg2 : i32, i32, i32
  }
}

</mosaic_0001>

<llo_original>
// kernel: tpu_custom_call.1
$region0: #{tpu_custom_call.1}
  #allocation0 [shape = 'u32[]', space=smem, size = 0x4, offset = 0x4, fixed_abs, tag = 'smem constant byte address 0x4 - core index']
  #allocation1 [shape = 'u32[72,128]{1,0:T(1,128)}', space=vmem, size = 0x9000, scoped, tag = 'internal scratch']
  %s0 = inlined_call_operand.hbm [shape: f32[2,256], index: 0, kind: input, shape index: {}]
  %s1 = inlined_call_operand.hbm [shape: f32[2,256], index: 1, kind: output, shape index: {}]
  %s2 = sld [smem:[#allocation0]]
  $region18: #{tpu_custom_call.1} parent=0
    _
  %s4 = ssub.s32 1, %s2
  %s5 = scalar_select 0, %s4, %s2
  $region1: #{tpu_custom_call.1} parent=0
    #allocation2 [shape = 'u8[2048]{0}', space=vmem, size = 0x800, scoped, tag = 'input window, operand 0, single buffered']
    #allocation3 [shape = 's32[1]{0}', space=sflag, size = 0x4, scoped, tag = 'scoped memory for tpu_custom_call.1']
    #allocation4 [shape = 's32[1]{0}', space=sflag, size = 0x4, scoped, tag = 'scoped memory for tpu_custom_call.1']
    #allocation5 [shape = 'u8[2048]{0}', space=vmem, size = 0x800, scoped, tag = 'output window, operand 0, single buffered']
    %6 = vsyncpa [#allocation3], 0
    %7 = vsyncpa [#allocation4], 0
    // Predicated region
    $region2: #{tpu_custom_call.1} parent=1 // pred_check
      _
    $region3: #{tpu_custom_call.1} parent=1 // pred_check_branch
      %9 = sbr.rel (0) target = $region5
    $region4: #{tpu_custom_call.1} parent=1 // pred_region
      %11 = vsyncadd [#allocation3], 0
      %s13 = sshll.u32 %s0, 4
      %s14 = int_to_ptr.hbm [resolvable:$true] %s13
      %s15 = sshll.u32 [#allocation2], 4
      %s16 = int_to_ptr.vmem [resolvable:$true] %s15
      %18 = dma.hbm_to_vmem [thread:$0]  %s14, 64, %s16, [#allocation3]
    $region5: #{tpu_custom_call.1} parent=1 // pred_fallthru
      _
    // Predicated region
    $region6: #{tpu_custom_call.1} parent=1 // pred_check
      _
    $region7: #{tpu_custom_call.1} parent=1 // pred_check_branch
      %20 = sbr.rel (0) target = $region9
    $region8: #{tpu_custom_call.1} parent=1 // pred_region
      %22 = dma.done [#allocation3], 64
    $region9: #{tpu_custom_call.1} parent=1 // pred_fallthru
      _
    %v23 = vld [vmem:[#allocation2] sm:$0xf]
    %v25 = vrot.slane %v23, 2
    %27 = vrot.lane.b32.xlu0 %v23, 96
    %v28 = vpop.permute.xlu0 %27
    %v29 = vrot.slane %v28, 2
    %31 = vrot.lane.b32.xlu0 %v23, 64
    %v32 = vpop.permute.xlu0 %31
    %v33 = vrot.slane %v32, 2
    %35 = vrot.lane.b32.xlu0 %v23, 32
    %v36 = vpop.permute.xlu0 %35
    %v37 = vrot.slane %v36, 2
    %v42 = vrot.slane %v28, 4
    %vm43 = vcmask 1047556
    %v44 = vsel %vm43, %v42, %v23
    %v46 = vunpack.c.l.s4 1934713408
    %v47 = vunpack.c.0.s8 %v46
    %v48 = vperm.slane %v44, %v47
    %v49 = vrot.slane %v48, 4
    %v50 = vsel %vm43, 0.0, %v49
    %v51 = vrot.slane %v36, 4
    %v52 = vsel %vm43, %v51, %v32
    %v54 = vunpack.c.l.s4 1934713408
    %v55 = vunpack.c.0.s8 %v54
    %v56 = vperm.slane %v52, %v55
    %v57 = vrot.slane %v56, 4
    %v58 = vsel %vm43, 0.0, %v57
    %v59 = vrot.slane %v29, 4
    %v60 = vsel %vm43, %v59, %v25
    %v62 = vunpack.c.l.s4 1934713408
    %v63 = vunpack.c.0.s8 %v62
    %v64 = vperm.slane %v60, %v63
    %v65 = vrot.slane %v64, 4
    %v66 = vsel %vm43, 0.0, %v65
    %v67 = vrot.slane %v37, 4
    %v68 = vsel %vm43, %v67, %v33
    %v70 = vunpack.c.l.s4 1934713408
    %v71 = vunpack.c.0.s8 %v70
    %v72 = vperm.slane %v68, %v71
    %v73 = vrot.slane %v72, 4
    %v74 = vsel %vm43, 0.0, %v73
    %83 = vst [vmem:[#allocation1] ss:$4 sm:$0xff] %v48
    %s84 = scalar_lea.vmem [#allocation1], 1
    %85 = vst [vmem:[%s84] ss:$4 sm:$0xff] %v56
    %s86 = scalar_lea.vmem [#allocation1], 2
    %87 = vst [vmem:[%s86] ss:$4 sm:$0xff] %v64
    %s88 = scalar_lea.vmem [#allocation1], 3
    %89 = vst [vmem:[%s88] ss:$4 sm:$0xff] %v72
    %v90 = vld.sshfl [vmem:[#allocation1] sm:$0xff pattern:$0x73625140]
    %s91 = scalar_lea.vmem [#allocation1], 32
    %92 = vst [vmem:[%s91] ss:$4 sm:$0xff] %v50
    %s93 = scalar_lea.vmem [#allocation1], 33
    %94 = vst [vmem:[%s93] ss:$4 sm:$0xff] %v58
    %s95 = scalar_lea.vmem [#allocation1], 34
    %96 = vst [vmem:[%s95] ss:$4 sm:$0xff] %v66
    %s97 = scalar_lea.vmem [#allocation1], 35
    %98 = vst [vmem:[%s97] ss:$4 sm:$0xff] %v74
    %v99 = vld.sshfl [vmem:[#allocation1 + $0x20] sm:$0xff pattern:$0x73625140]
    %102 = vxpose.xlu0.b32.start [1/16] %v90, 128
    %103 = vxpose.xlu0.b32.cont [2/16] 0.0, 128
    %104 = vxpose.xlu0.b32.cont [3/16] 0.0, 128
    %105 = vxpose.xlu0.b32.cont [4/16] 0.0, 128
    %106 = vxpose.xlu0.b32.cont [5/16] 0.0, 128
    %107 = vxpose.xlu0.b32.cont [6/16] 0.0, 128
    %108 = vxpose.xlu0.b32.cont [7/16] 0.0, 128
    %109 = vxpose.xlu0.b32.cont [8/16] 0.0, 128
    %110 = vxpose.xlu0.b32.cont [9/16] 0.0, 128
    %111 = vxpose.xlu0.b32.cont [10/16] 0.0, 128
    %112 = vxpose.xlu0.b32.cont [11/16] 0.0, 128
    %113 = vxpose.xlu0.b32.cont [12/16] 0.0, 128
    %114 = vxpose.xlu0.b32.cont [13/16] 0.0, 128
    %115 = vxpose.xlu0.b32.cont [14/16] 0.0, 128
    %116 = vxpose.xlu0.b32.cont [15/16] 0.0, 128
    %117 = vxpose.xlu0.b32.end [16/16] 0.0, 128
    %v118 = vpop.trf.xlu0
    %v119 = vpop.trf.xlu0
    %v120 = vpop.trf.xlu0
    %v121 = vpop.trf.xlu0
    %v122 = vpop.trf.xlu0
    %v123 = vpop.trf.xlu0
    %v124 = vpop.trf.xlu0
    %v125 = vpop.trf.xlu0
    %v126 = vpop.trf.xlu0
    %v127 = vpop.trf.xlu0
    %v128 = vpop.trf.xlu0
    %v129 = vpop.trf.xlu0
    %v130 = vpop.trf.xlu0
    %v131 = vpop.trf.xlu0
    %v132 = vpop.trf.xlu0
    %v133 = vpop.trf.xlu0
    %134 = vxpose.xlu0.b32.start [1/16] %v99, 128
    %135 = vxpose.xlu0.b32.cont [2/16] 0.0, 128
    %136 = vxpose.xlu0.b32.cont [3/16] 0.0, 128
    %137 = vxpose.xlu0.b32.cont [4/16] 0.0, 128
    %138 = vxpose.xlu0.b32.cont [5/16] 0.0, 128
    %139 = vxpose.xlu0.b32.cont [6/16] 0.0, 128
    %140 = vxpose.xlu0.b32.cont [7/16] 0.0, 128
    %141 = vxpose.xlu0.b32.cont [8/16] 0.0, 128
    %142 = vxpose.xlu0.b32.cont [9/16] 0.0, 128
    %143 = vxpose.xlu0.b32.cont [10/16] 0.0, 128
    %144 = vxpose.xlu0.b32.cont [11/16] 0.0, 128
    %145 = vxpose.xlu0.b32.cont [12/16] 0.0, 128
    %146 = vxpose.xlu0.b32.cont [13/16] 0.0, 128
    %147 = vxpose.xlu0.b32.cont [14/16] 0.0, 128
    %148 = vxpose.xlu0.b32.cont [15/16] 0.0, 128
    %149 = vxpose.xlu0.b32.end [16/16] 0.0, 128
    %v150 = vpop.trf.xlu0
    %v151 = vpop.trf.xlu0
    %v152 = vpop.trf.xlu0
    %v153 = vpop.trf.xlu0
    %v154 = vpop.trf.xlu0
    %v155 = vpop.trf.xlu0
    %v156 = vpop.trf.xlu0
    %v157 = vpop.trf.xlu0
    %v158 = vpop.trf.xlu0
    %v159 = vpop.trf.xlu0
    %v160 = vpop.trf.xlu0
    %v161 = vpop.trf.xlu0
    %v162 = vpop.trf.xlu0
    %v163 = vpop.trf.xlu0
    %v164 = vpop.trf.xlu0
    %v165 = vpop.trf.xlu0
    %v166 = vrot.slane %v118, 4
    %v167 = vsel %vm43, 0.0, %v166
    %v169 = vunpack.c.l.s4 1983009808
    %v170 = vunpack.c.0.s8 %v169
    %v171 = vperm.slane %v118, %v170
    %v173 = vunpack.c.l.s4 1983009808
    %v174 = vunpack.c.0.s8 %v173
    %v175 = vperm.slane %v167, %v174
    %v176 = vrot.slane %v150, 4
    %v177 = vsel %vm43, 0.0, %v176
    %v179 = vunpack.c.l.s4 1983009808
    %v180 = vunpack.c.0.s8 %v179
    %v181 = vperm.slane %v150, %v180
    %v183 = vunpack.c.l.s4 1983009808
    %v184 = vunpack.c.0.s8 %v183
    %v185 = vperm.slane %v177, %v184
    %v186 = vrot.slane %v181, 4
    %v187 = vsel %vm43, %v186, %v171
    %v188 = vrot.slane %v171, 4
    %v189 = vsel %vm43, %v181, %v188
    %v191 = vunpack.c.l.s4 1934713408
    %v192 = vunpack.c.0.s8 %v191
    %v193 = vperm.slane %v187, %v192
    %v195 = vunpack.c.l.s4 1934713408
    %v196 = vunpack.c.0.s8 %v195
    %v197 = vperm.slane %v189, %v196
    %v198 = vrot.slane %v185, 4
    %v199 = vsel %vm43, %v198, %v175
    %v200 = vrot.slane %v175, 4
    %v201 = vsel %vm43, %v185, %v200
    %v203 = vunpack.c.l.s4 1934713408
    %v204 = vunpack.c.0.s8 %v203
    %v205 = vperm.slane %v199, %v204
    %v207 = vunpack.c.l.s4 1934713408
    %v208 = vunpack.c.0.s8 %v207
    %v209 = vperm.slane %v201, %v208
    %v210 = vrot.slane %v193, 4
    %v211 = vsel %vm43, 0.0, %v210
    %v212 = vrot.slane %v197, 4
    %v213 = vsel %vm43, 0.0, %v212
    %v214 = vrot.slane %v205, 4
    %v215 = vsel %vm43, 0.0, %v214
    %v216 = vrot.slane %v209, 4
    %v217 = vsel %vm43, 0.0, %v216
    %v218 = vrot.slane %v119, 4
    %v219 = vsel %vm43, 0.0, %v218
    %v221 = vunpack.c.l.s4 1983009808
    %v222 = vunpack.c.0.s8 %v221
    %v223 = vperm.slane %v119, %v222
    %v225 = vunpack.c.l.s4 1983009808
    %v226 = vunpack.c.0.s8 %v225
    %v227 = vperm.slane %v219, %v226
    %v228 = vrot.slane %v151, 4
    %v229 = vsel %vm43, 0.0, %v228
    %v231 = vunpack.c.l.s4 1983009808
    %v232 = vunpack.c.0.s8 %v231
    %v233 = vperm.slane %v151, %v232
    %v235 = vunpack.c.l.s4 1983009808
    %v236 = vunpack.c.0.s8 %v235
    %v237 = vperm.slane %v229, %v236
    %v238 = vrot.slane %v233, 4
    %v239 = vsel %vm43, %v238, %v223
    %v240 = vrot.slane %v223, 4
    %v241 = vsel %vm43, %v233, %v240
    %v243 = vunpack.c.l.s4 1934713408
    %v244 = vunpack.c.0.s8 %v243
    %v245 = vperm.slane %v239, %v244
    %v247 = vunpack.c.l.s4 1934713408
    %v248 = vunpack.c.0.s8 %v247
    %v249 = vperm.slane %v241, %v248
    %v250 = vrot.slane %v237, 4
    %v251 = vsel %vm43, %v250, %v227
    %v252 = vrot.slane %v227, 4
    %v253 = vsel %vm43, %v237, %v252
    %v255 = vunpack.c.l.s4 1934713408
    %v256 = vunpack.c.0.s8 %v255
    %v257 = vperm.slane %v251, %v256
    %v259 = vunpack.c.l.s4 1934713408
    %v260 = vunpack.c.0.s8 %v259
    %v261 = vperm.slane %v253, %v260
    %v262 = vrot.slane %v245, 4
    %v263 = vsel %vm43, 0.0, %v262
    %v264 = vrot.slane %v249, 4
    %v265 = vsel %vm43, 0.0, %v264
    %v266 = vrot.slane %v257, 4
    %v267 = vsel %vm43, 0.0, %v266
    %v268 = vrot.slane %v261, 4
    %v269 = vsel %vm43, 0.0, %v268
    %v270 = vrot.slane %v120, 4
    %v271 = vsel %vm43, 0.0, %v270
    %v273 = vunpack.c.l.s4 1983009808
    %v274 = vunpack.c.0.s8 %v273
    %v275 = vperm.slane %v120, %v274
    %v277 = vunpack.c.l.s4 1983009808
    %v278 = vunpack.c.0.s8 %v277
    %v279 = vperm.slane %v271, %v278
    %v280 = vrot.slane %v152, 4
    %v281 = vsel %vm43, 0.0, %v280
    %v283 = vunpack.c.l.s4 1983009808
    %v284 = vunpack.c.0.s8 %v283
    %v285 = vperm.slane %v152, %v284
    %v287 = vunpack.c.l.s4 1983009808
    %v288 = vunpack.c.0.s8 %v287
    %v289 = vperm.slane %v281, %v288
    %v290 = vrot.slane %v285, 4
    %v291 = vsel %vm43, %v290, %v275
    %v292 = vrot.slane %v275, 4
    %v293 = vsel %vm43, %v285, %v292
    %v295 = vunpack.c.l.s4 1934713408
    %v296 = vunpack.c.0.s8 %v295
    %v297 = vperm.slane %v291, %v296
    %v299 = vunpack.c.l.s4 1934713408
    %v300 = vunpack.c.0.s8 %v299
    %v301 = vperm.slane %v293, %v300
    %v302 = vrot.slane %v289, 4
    %v303 = vsel %vm43, %v302, %v279
    %v304 = vrot.slane %v279, 4
    %v305 = vsel %vm43, %v289, %v304
    %v307 = vunpack.c.l.s4 1934713408
    %v308 = vunpack.c.0.s8 %v307
    %v309 = vperm.slane %v303, %v308
    %v311 = vunpack.c.l.s4 1934713408
    %v312 = vunpack.c.0.s8 %v311
    %v313 = vperm.slane %v305, %v312
    %v314 = vrot.slane %v297, 4
    %v315 = vsel %vm43, 0.0, %v314
    %v316 = vrot.slane %v301, 4
    %v317 = vsel %vm43, 0.0, %v316
    %v318 = vrot.slane %v309, 4
    %v319 = vsel %vm43, 0.0, %v318
    %v320 = vrot.slane %v313, 4
    %v321 = vsel %vm43, 0.0, %v320
    %v322 = vrot.slane %v121, 4
    %v323 = vsel %vm43, 0.0, %v322
    %v325 = vunpack.c.l.s4 1983009808
    %v326 = vunpack.c.0.s8 %v325
    %v327 = vperm.slane %v121, %v326
    %v329 = vunpack.c.l.s4 1983009808
    %v330 = vunpack.c.0.s8 %v329
    %v331 = vperm.slane %v323, %v330
    %v332 = vrot.slane %v153, 4
    %v333 = vsel %vm43, 0.0, %v332
    %v335 = vunpack.c.l.s4 1983009808
    %v336 = vunpack.c.0.s8 %v335
    %v337 = vperm.slane %v153, %v336
    %v339 = vunpack.c.l.s4 1983009808
    %v340 = vunpack.c.0.s8 %v339
    %v341 = vperm.slane %v333, %v340
    %v342 = vrot.slane %v337, 4
    %v343 = vsel %vm43, %v342, %v327
    %v344 = vrot.slane %v327, 4
    %v345 = vsel %vm43, %v337, %v344
    %v347 = vunpack.c.l.s4 1934713408
    %v348 = vunpack.c.0.s8 %v347
    %v349 = vperm.slane %v343, %v348
    %v351 = vunpack.c.l.s4 1934713408
    %v352 = vunpack.c.0.s8 %v351
    %v353 = vperm.slane %v345, %v352
    %v354 = vrot.slane %v341, 4
    %v355 = vsel %vm43, %v354, %v331
    %v356 = vrot.slane %v331, 4
    %v357 = vsel %vm43, %v341, %v356
    %v359 = vunpack.c.l.s4 1934713408
    %v360 = vunpack.c.0.s8 %v359
    %v361 = vperm.slane %v355, %v360
    %v363 = vunpack.c.l.s4 1934713408
    %v364 = vunpack.c.0.s8 %v363
    %v365 = vperm.slane %v357, %v364
    %v366 = vrot.slane %v349, 4
    %v367 = vsel %vm43, 0.0, %v366
    %v368 = vrot.slane %v353, 4
    %v369 = vsel %vm43, 0.0, %v368
    %v370 = vrot.slane %v361, 4
    %v371 = vsel %vm43, 0.0, %v370
    %v372 = vrot.slane %v365, 4
    %v373 = vsel %vm43, 0.0, %v372
    %375 = vrot.lane.b32.xlu0 %v211, 8
    %v376 = vpop.permute.xlu0 %375
    %379 = vrot.lane.b32.xlu0 %v197, 16
    %v380 = vpop.permute.xlu0 %379
    %383 = vrot.lane.b32.xlu0 %v213, 24
    %v384 = vpop.permute.xlu0 %383
    %387 = vrot.lane.b32.xlu0 %v205, 32
    %v388 = vpop.permute.xlu0 %387
    %391 = vrot.lane.b32.xlu0 %v215, 40
    %v392 = vpop.permute.xlu0 %391
    %395 = vrot.lane.b32.xlu0 %v209, 48
    %v396 = vpop.permute.xlu0 %395
    %399 = vrot.lane.b32.xlu0 %v217, 56
    %v400 = vpop.permute.xlu0 %399
    %403 = vrot.lane.b32.xlu0 %v245, 64
    %v404 = vpop.permute.xlu0 %403
    %407 = vrot.lane.b32.xlu0 %v263, 72
    %v408 = vpop.permute.xlu0 %407
    %411 = vrot.lane.b32.xlu0 %v249, 80
    %v412 = vpop.permute.xlu0 %411
    %415 = vrot.lane.b32.xlu0 %v265, 88
    %v416 = vpop.permute.xlu0 %415
    %419 = vrot.lane.b32.xlu0 %v257, 96
    %v420 = vpop.permute.xlu0 %419
    %423 = vrot.lane.b32.xlu0 %v267, 104
    %v424 = vpop.permute.xlu0 %423
    %427 = vrot.lane.b32.xlu0 %v261, 112
    %v428 = vpop.permute.xlu0 %427
    %431 = vrot.lane.b32.xlu0 %v269, 120
    %v432 = vpop.permute.xlu0 %431
    %435 = vrot.lane.b32.xlu0 %v315, 8
    %v436 = vpop.permute.xlu0 %435
    %439 = vrot.lane.b32.xlu0 %v301, 16
    %v440 = vpop.permute.xlu0 %439
    %443 = vrot.lane.b32.xlu0 %v317, 24
    %v444 = vpop.permute.xlu0 %443
    %447 = vrot.lane.b32.xlu0 %v309, 32
    %v448 = vpop.permute.xlu0 %447
    %451 = vrot.lane.b32.xlu0 %v319, 40
    %v452 = vpop.permute.xlu0 %451
    %455 = vrot.lane.b32.xlu0 %v313, 48
    %v456 = vpop.permute.xlu0 %455
    %459 = vrot.lane.b32.xlu0 %v321, 56
    %v460 = vpop.permute.xlu0 %459
    %463 = vrot.lane.b32.xlu0 %v349, 64
    %v464 = vpop.permute.xlu0 %463
    %467 = vrot.lane.b32.xlu0 %v367, 72
    %v468 = vpop.permute.xlu0 %467
    %471 = vrot.lane.b32.xlu0 %v353, 80
    %v472 = vpop.permute.xlu0 %471
    %475 = vrot.lane.b32.xlu0 %v369, 88
    %v476 = vpop.permute.xlu0 %475
    %479 = vrot.lane.b32.xlu0 %v361, 96
    %v480 = vpop.permute.xlu0 %479
    %483 = vrot.lane.b32.xlu0 %v371, 104
    %v484 = vpop.permute.xlu0 %483
    %487 = vrot.lane.b32.xlu0 %v365, 112
    %v488 = vpop.permute.xlu0 %487
    %491 = vrot.lane.b32.xlu0 %v373, 120
    %v492 = vpop.permute.xlu0 %491
    %vm494 = vcmask 64512
    %v495 = vsel %vm494, %v193, %v376
    %vm496 = vcmask 130048
    %v497 = vsel %vm496, %v495, %v380
    %vm498 = vcmask 195584
    %v499 = vsel %vm498, %v497, %v384
    %vm500 = vcmask 261120
    %v501 = vsel %vm500, %v499, %v388
    %vm502 = vcmask 326656
    %v503 = vsel %vm502, %v501, %v392
    %vm504 = vcmask 392192
    %v505 = vsel %vm504, %v503, %v396
    %vm506 = vcmask 457728
    %v507 = vsel %vm506, %v505, %v400
    %vm508 = vcmask 523264
    %v509 = vsel %vm508, %v507, %v404
    %vm510 = vcmask 588800
    %v511 = vsel %vm510, %v509, %v408
    %vm512 = vcmask 654336
    %v513 = vsel %vm512, %v511, %v412
    %vm514 = vcmask 719872
    %v515 = vsel %vm514, %v513, %v416
    %vm516 = vcmask 785408
    %v517 = vsel %vm516, %v515, %v420
    %vm518 = vcmask 850944
    %v519 = vsel %vm518, %v517, %v424
    %vm520 = vcmask 916480
    %v521 = vsel %vm520, %v519, %v428
    %vm522 = vcmask 982016
    %v523 = vsel %vm522, %v521, %v432
    %v524 = vsel %vm494, %v297, %v436
    %v525 = vsel %vm496, %v524, %v440
    %v526 = vsel %vm498, %v525, %v444
    %v527 = vsel %vm500, %v526, %v448
    %v528 = vsel %vm502, %v527, %v452
    %v529 = vsel %vm504, %v528, %v456
    %v530 = vsel %vm506, %v529, %v460
    %v531 = vsel %vm508, %v530, %v464
    %v532 = vsel %vm510, %v531, %v468
    %v533 = vsel %vm512, %v532, %v472
    %v534 = vsel %vm514, %v533, %v476
    %v535 = vsel %vm516, %v534, %v480
    %v536 = vsel %vm518, %v535, %v484
    %v537 = vsel %vm520, %v536, %v488
    %v538 = vsel %vm522, %v537, %v492
    %v541 = vrot.slane %v538, 6
    %vm542 = vcmask 1041408
    %v543 = vsel %vm542, %v523, %v541
    %545 = vst [vmem:[#allocation5] sm:$0xf] %v543
    // Predicated region
    $region10: #{tpu_custom_call.1} parent=1 // pred_check
      _
    $region11: #{tpu_custom_call.1} parent=1 // pred_check_branch
      %547 = sbr.rel (0) target = $region13
    $region12: #{tpu_custom_call.1} parent=1 // pred_region
      %549 = vsyncadd [#allocation4], 0
      %s551 = sshll.u32 [#allocation5], 4
      %s552 = int_to_ptr.vmem [resolvable:$true] %s551
      %s553 = sshll.u32 %s1, 4
      %s554 = int_to_ptr.hbm [resolvable:$true] %s553
      %556 = dma.vmem_to_hbm [thread:$0]  %s552, 64, %s554, [#allocation4]
    $region13: #{tpu_custom_call.1} parent=1 // pred_fallthru
      _
    // Predicated region
    $region14: #{tpu_custom_call.1} parent=1 // pred_check
      _
    $region15: #{tpu_custom_call.1} parent=1 // pred_check_branch
      %558 = sbr.rel (0) target = $region17
    $region16: #{tpu_custom_call.1} parent=1 // pred_region
      %560 = dma.done [#allocation4], 64
    $region17: #{tpu_custom_call.1} parent=1 // pred_fallthru
      _
    %561 = vsyncpa [#allocation3], 1
    %562 = vsyncpa [#allocation4], 1

// kernel: tpu_custom_call.1
$region0: #{tpu_custom_call.1}
  #allocation0 [shape = 'u32[]', space=smem, size = 0x4, offset = 0x4, fixed_abs, tag = 'smem constant byte address 0x4 - core index']
  #allocation1 [shape = 'u32[72,128]{1,0:T(1,128)}', space=vmem, size = 0x9000, scoped, tag = 'internal scratch']
  %s0 = inlined_call_operand.hbm [shape: f32[2,8,32], index: 0, kind: input, shape index: {}]
  %s1 = inlined_call_operand.vmem [shape: f32[2,32,8], index: 1, kind: output, shape index: {}]
  %s2 = sld [smem:[#allocation0]]
  $region41: #{tpu_custom_call.1} parent=0
    _
  %s4 = ssub.s32 1, %s2
  %s5 = scalar_select 0, %s4, %s2
  $region1: #{tpu_custom_call.1} parent=0
    #allocation2 [shape = 'u8[8192]{0}', space=vmem, size = 0x2000, scoped, tag = 'input window, operand 0']
    #allocation3 [shape = 's32[2]{0}', space=sflag, size = 0x8, scoped, tag = 'scoped memory for tpu_custom_call.1']
    %6 = vsyncpa [#allocation3], 0
    %s7 = scalar_lea.sflag [#allocation3], 1
    %8 = vsyncpa %s7, 0
    loop: start=0, step=1, limit=4
    $region2: #{tpu_custom_call.1} parent=1 // loop_pre_header
      _
    $region3: #{tpu_custom_call.1} parent=1 // loop_header
      %s10 = sphi 0, %s14
      %p11 = scmp.ge.s32.totalorder %s10, 4
      %s17 = sphi 0, %s36
      %s18 = sphi 0, %s32
      %s19 = sphi 0, %s28
      %s20 = sphi 0, %s17
      %s21 = sphi 0, %s18
      %s22 = sphi 0, %s19
      %s23 = sphi 0, %s20
      %s24 = sphi 0, %s21
      %s25 = sphi 0, %s22
      %s43 = sphi 0, %s45
      %s46 = sphi 0, %s43
      %s47 = sphi 0, %s46
      %s63 = sphi 0, %s47
      %s73 = sphi 0, %s75
      %s76 = sphi 0, %s73
      %s77 = sphi 0, %s76
      %s93 = sphi 0, %s77
    $region4: #{tpu_custom_call.1} parent=1 // loop_header_branch
      %13 = sbr.rel (%p11) target = $region8
    $region5: #{tpu_custom_call.1} parent=1 // loop_body
      %s15 = ssub.s32 %s10, 1
      %s16 = ssub.s32 %s10, 2
      %s26 = sadd.s32 1, %s19
      %p27 = scmp.ge.s32.totalorder %s26, 1
      %s28 = scalar_select %p27, 0, %s26
      %s29 = sadd.s32 1, %s18
      %s30 = scalar_select %p27, %s29, %s18
      %p31 = scmp.ge.s32.totalorder %s30, 1
      %s32 = scalar_select %p31, 0, %s30
      %s33 = sadd.s32 1, %s17
      %s34 = scalar_select %p31, %s33, %s17
      %p35 = scmp.ge.s32.totalorder %s34, 2
      %s36 = scalar_select %p35, 0, %s34
      %s37 = ssub.s32 %s17, %s36
      %s38 = ssub.s32 %s19, %s28
      %s39 = sor.u32 %s37, %s38
      %s40 = ssub.s32 %s18, %s32
      %s41 = sor.u32 %s39, %s40
      %p42 = scmp.eq.s32.totalorder %s41, 0
      %s44 = sadd.s32 %s43, 1
      %s45 = scalar_select %p42, %s43, %s44
      %p48 = pneg %p42
      %p49 = scmp.eq.s32.totalorder %s10, 1
      %p50 = por %p48, %p49
      %p51 = scmp.ne.s32.totalorder %s43, %s46
      %p52 = scmp.eq.s32.totalorder %s10, 0
      %p53 = por %p51, %p52
      %p54 = scmp.ne.s32.totalorder %s43, %s46
      %p55 = scmp.eq.s32.totalorder %s15, 1
      %p56 = por %p54, %p55
      %p57 = scmp.ne.s32.totalorder %s46, %s47
      %p58 = scmp.eq.s32.totalorder %s15, 0
      %p59 = por %p57, %p58
      %p60 = scmp.ne.s32.totalorder %s46, %s47
      %p61 = scmp.eq.s32.totalorder %s16, 1
      %p62 = por %p60, %p61
      %p64 = scmp.ne.s32.totalorder %s47, %s63
      %p65 = scmp.eq.s32.totalorder %s16, 0
      %p66 = por %p64, %p65
      %s67 = ssub.s32 %s17, %s36
      %s68 = ssub.s32 %s18, %s32
      %s69 = sor.u32 %s67, %s68
      %s70 = ssub.s32 %s19, %s28
      %s71 = sor.u32 %s69, %s70
      %p72 = scmp.eq.s32.totalorder %s71, 0
      %s74 = sadd.s32 %s73, 1
      %s75 = scalar_select %p72, %s73, %s74
      %p78 = pneg %p72
      %p79 = scmp.eq.s32.totalorder %s10, 1
      %p80 = por %p78, %p79
      %p81 = scmp.ne.s32.totalorder %s73, %s76
      %p82 = scmp.eq.s32.totalorder %s10, 0
      %p83 = por %p81, %p82
      %p84 = scmp.ne.s32.totalorder %s73, %s76
      %p85 = scmp.eq.s32.totalorder %s15, 1
      %p86 = por %p84, %p85
      %p87 = scmp.ne.s32.totalorder %s76, %s77
      %p88 = scmp.eq.s32.totalorder %s15, 0
      %p89 = por %p87, %p88
      %p90 = scmp.ne.s32.totalorder %s76, %s77
      %p91 = scmp.eq.s32.totalorder %s16, 1
      %p92 = por %p90, %p91
      %p94 = scmp.ne.s32.totalorder %s77, %s93
      %p95 = scmp.eq.s32.totalorder %s16, 0
      %p96 = por %p94, %p95
      %p97 = scmp.le.s32.totalorder 1, %s10
      %p98 = scmp.lt.s32.totalorder %s10, 3
      %p99 = pnand %p97, %p98
      %p100 = pneg %p99
      // Predicated region
      $region9: #{tpu_custom_call.1} parent=5 // pred_check
        _
      $region10: #{tpu_custom_call.1} parent=5 // pred_check_branch
        %102 = sbr.rel (%p99) target = $region12
      $region11: #{tpu_custom_call.1} parent=5 // pred_region
        %s103 = ssub.s32 %s10, 1
      $region12: #{tpu_custom_call.1} parent=5 // pred_fallthru
        _
      %p104 = scmp.lt.s32.totalorder %s10, 2
      // Predicated region
      $region13: #{tpu_custom_call.1} parent=5 // pred_check
        %p105 = pneg %p104
      $region14: #{tpu_custom_call.1} parent=5 // pred_check_branch
        %107 = sbr.rel (%p105) target = $region16
      $region15: #{tpu_custom_call.1} parent=5 // pred_region
        // Predicated region
        $region17: #{tpu_custom_call.1} parent=15 // pred_check
          %p108 = pneg %p53
        $region18: #{tpu_custom_call.1} parent=15 // pred_check_branch
          %110 = sbr.rel (%p108) target = $region20
        $region19: #{tpu_custom_call.1} parent=15 // pred_region
          %s111 = sand.u32 %s43, 1
          %s112 = scalar_lea.sflag [#allocation3], %s111
          %s113 = sand.u32 %s43, 1
          %s114 = smul.addr %s113, 8
          %s115 = scalar_lea.vmem [#allocation2], %s114
          %117 = vsyncadd %s112, 0
          %s118 = sadd.s32 %s18, %s19
          %s119 = sadd.s32 %s118, %s17
          %s120 = smul.addr %s119, 8
          %s121 = scalar_lea.hbm %s0, %s120
          %s123 = sshll.u32 %s121, 4
          %s124 = int_to_ptr.hbm [resolvable:$true] %s123
          %s125 = sshll.u32 %s115, 4
          %s126 = int_to_ptr.vmem [resolvable:$true] %s125
          %128 = dma.hbm_to_vmem [thread:$0]  %s124, 128, %s126, %s112
        $region20: #{tpu_custom_call.1} parent=15 // pred_fallthru
          _
      $region16: #{tpu_custom_call.1} parent=5 // pred_fallthru
        _
      %p129 = scmp.le.s32.totalorder 1, %s10
      %p130 = scmp.lt.s32.totalorder %s10, 3
      %p131 = pnand %p129, %p130
      %p132 = pneg %p131
      // Predicated region
      $region21: #{tpu_custom_call.1} parent=5 // pred_check
        _
      $region22: #{tpu_custom_call.1} parent=5 // pred_check_branch
        %134 = sbr.rel (%p131) target = $region24
      $region23: #{tpu_custom_call.1} parent=5 // pred_region
        %s135 = ssub.s32 %s10, 1
        %s136 = sand.u32 %s46, 1
        %s137 = scalar_lea.sflag [#allocation3], %s136
        %s138 = sand.u32 %s46, 1
        %s139 = smul.addr %s138, 8
        %s140 = scalar_lea.vmem [#allocation2], %s139
        // Predicated region
        $region25: #{tpu_custom_call.1} parent=23 // pred_check
          %p141 = pneg %p59
        $region26: #{tpu_custom_call.1} parent=23 // pred_check_branch
          %143 = sbr.rel (%p141) target = $region28
        $region27: #{tpu_custom_call.1} parent=23 // pred_region
          %145 = dma.done %s137, 128
        $region28: #{tpu_custom_call.1} parent=23 // pred_fallthru
          _
        %s146 = sand.u32 %s46, 1
        %s147 = scalar_lea.sflag [#allocation3], %s146
        %s148 = sand.u32 %s46, 1
        %s149 = smul.addr %s148, 8
        %s150 = scalar_lea.vmem [#allocation2], %s149
        %p151 = pneg %p59
        %p152 = pneg %p56
        %p153 = pneg %p89
        %p154 = pneg %p86
        %s155 = smul.u32 4, %s21
        %p156 = scmp.lt.s32.totalorder %s20, 1
        %s157 = scalar_select %p156, %s20, 1
        %p158 = scmp.lt.s32.totalorder %s155, 3
        %s159 = scalar_select %p158, %s155, 3
        %p160 = scmp.lt.s32.totalorder %s22, 0
        %s161 = scalar_select %p160, %s22, 0
        %s162 = sadd.s32 %s161, %s159
        %s163 = smul.addr %s157, 4
        %s164 = sadd.s32 %s162, %s163
        %s165 = smul.addr %s164, 8
        %s166 = scalar_lea.vmem %s1, %s165
        %s167 = smul.u32 4, %s21
        %p168 = scmp.lt.s32.totalorder %s20, 1
        %s169 = scalar_select %p168, %s20, 1
        %p170 = scmp.lt.s32.totalorder %s167, 3
        %s171 = scalar_select %p170, %s167, 3
        %p172 = scmp.lt.s32.totalorder %s22, 0
        %s173 = scalar_select %p172, %s22, 0
        %s174 = sadd.s32 %s173, %s171
        %s175 = smul.addr %s169, 4
        %s176 = sadd.s32 %s174, %s175
        %s177 = smul.addr %s176, 8
        %s178 = scalar_lea.vmem %s1, %s177
        %s179 = smul.u32 4, %s21
        %v180 = vld [vmem:[%s140] sm:$0xff]
        %181 = vxpose.xlu0.b32.start [1/16] %v180, 128
        %182 = vxpose.xlu0.b32.cont [2/16] 0.0, 128
        %183 = vxpose.xlu0.b32.cont [3/16] 0.0, 128
        %184 = vxpose.xlu0.b32.cont [4/16] 0.0, 128
        %185 = vxpose.xlu0.b32.cont [5/16] 0.0, 128
        %186 = vxpose.xlu0.b32.cont [6/16] 0.0, 128
        %187 = vxpose.xlu0.b32.cont [7/16] 0.0, 128
        %188 = vxpose.xlu0.b32.cont [8/16] 0.0, 128
        %189 = vxpose.xlu0.b32.cont [9/16] 0.0, 128
        %190 = vxpose.xlu0.b32.cont [10/16] 0.0, 128
        %191 = vxpose.xlu0.b32.cont [11/16] 0.0, 128
        %192 = vxpose.xlu0.b32.cont [12/16] 0.0, 128
        %193 = vxpose.xlu0.b32.cont [13/16] 0.0, 128
        %194 = vxpose.xlu0.b32.cont [14/16] 0.0, 128
        %195 = vxpose.xlu0.b32.cont [15/16] 0.0, 128
        %196 = vxpose.xlu0.b32.end [16/16] 0.0, 128
        %v197 = vpop.trf.xlu0
        %v198 = vpop.trf.xlu0
        %v199 = vpop.trf.xlu0
        %v200 = vpop.trf.xlu0
        %v201 = vpop.trf.xlu0
        %v202 = vpop.trf.xlu0
        %v203 = vpop.trf.xlu0
        %v204 = vpop.trf.xlu0
        %v205 = vpop.trf.xlu0
        %v206 = vpop.trf.xlu0
        %v207 = vpop.trf.xlu0
        %v208 = vpop.trf.xlu0
        %v209 = vpop.trf.xlu0
        %v210 = vpop.trf.xlu0
        %v211 = vpop.trf.xlu0
        %v212 = vpop.trf.xlu0
        %vm213 = vcmask 64512
        %214 = vst.msk [vmem:[%s178] sm:$0xff] %vm213, %v197
        %215 = vst.msk [vmem:[%s178 + $0x8] sm:$0xff] %vm213, %v198
        %216 = vst.msk [vmem:[%s178 + $0x10] sm:$0xff] %vm213, %v199
        %217 = vst.msk [vmem:[%s178 + $0x18] sm:$0xff] %vm213, %v200
        %s218 = smul.u32 4, %s21
        %p219 = scmp.lt.s32.totalorder %s20, 1
        %s220 = scalar_select %p219, %s20, 1
        %p221 = scmp.lt.s32.totalorder %s218, 3
        %s222 = scalar_select %p221, %s218, 3
        %p223 = scmp.lt.s32.totalorder %s22, 0
        %s224 = scalar_select %p223, %s22, 0
        %s225 = sadd.s32 %s224, %s222
        %s226 = smul.addr %s220, 4
        %s227 = sadd.s32 %s225, %s226
        %s228 = smul.addr %s227, 8
        %s229 = scalar_lea.vmem %s1, %s228
        // Predicated region
        $region29: #{tpu_custom_call.1} parent=23 // pred_check
          %p230 = pneg %p86
        $region30: #{tpu_custom_call.1} parent=23 // pred_check_branch
          %232 = sbr.rel (%p230) target = $region32
        $region31: #{tpu_custom_call.1} parent=23 // pred_region
          %s233 = smul.u32 4, %s21
        $region32: #{tpu_custom_call.1} parent=23 // pred_fallthru
          _
      $region24: #{tpu_custom_call.1} parent=5 // pred_fallthru
        _
      %p234 = scmp.le.s32.totalorder 2, %s10
      // Predicated region
      $region33: #{tpu_custom_call.1} parent=5 // pred_check
        %p235 = pneg %p234
      $region34: #{tpu_custom_call.1} parent=5 // pred_check_branch
        %237 = sbr.rel (%p235) target = $region36
      $region35: #{tpu_custom_call.1} parent=5 // pred_region
        %s238 = ssub.s32 %s10, 2
        // Predicated region
        $region37: #{tpu_custom_call.1} parent=35 // pred_check
          %p239 = pneg %p92
        $region38: #{tpu_custom_call.1} parent=35 // pred_check_branch
          %241 = sbr.rel (%p239) target = $region40
        $region39: #{tpu_custom_call.1} parent=35 // pred_region
          %s242 = smul.u32 4, %s24
          %p243 = scmp.lt.s32.totalorder %s23, 1
          %s244 = scalar_select %p243, %s23, 1
          %p245 = scmp.lt.s32.totalorder %s242, 3
          %s246 = scalar_select %p245, %s242, 3
          %p247 = scmp.lt.s32.totalorder %s25, 0
          %s248 = scalar_select %p247, %s25, 0
          %s249 = sadd.s32 %s248, %s246
          %s250 = smul.addr %s244, 4
          %s251 = sadd.s32 %s249, %s250
          %s252 = smul.addr %s251, 8
          %s253 = scalar_lea.vmem %s1, %s252
        $region40: #{tpu_custom_call.1} parent=35 // pred_fallthru
          _
      $region36: #{tpu_custom_call.1} parent=5 // pred_fallthru
        _
    $region6: #{tpu_custom_call.1} parent=1 // loop_footer
      %s14 = sadd.s32 1, %s10
    $region7: #{tpu_custom_call.1} parent=1 // loop_footer_branch
      %9 = sbr.rel target = $region3
    $region8: #{tpu_custom_call.1} parent=1 // loop_exit
      _
    %254 = vsyncpa [#allocation3], 1
    %s255 = scalar_lea.sflag [#allocation3], 1
    %256 = vsyncpa %s255, 1

</llo_original>
